<compile_context>
chip_gen: v6e
topology: v6e:2x2x1
jax: 0.10.0
libtpu: 0.0.40
codegen_flags: <defaults>
</compile_context>

<pallas_src>
import functools
import math

import jax
import jax.numpy as jnp
from jax.experimental import pallas as pl
from jax.experimental.pallas import tpu as pltpu


# ---------------------------------------------------------------------------
# helpers
# ---------------------------------------------------------------------------
def _round_up(x, m):
    return ((x + m - 1) // m) * m


def _pick_tile(total, cap, align=128):
    """Largest multiple of `align` that divides `total` and is <= cap (>= align)."""
    cap = max(align, min(cap, total))
    best = align
    d = align
    while d <= cap:
        if total % d == 0:
            best = d
        d += align
    return best


def _maybe_cast(v, compute_dtype):
    if compute_dtype is None or v.dtype == compute_dtype:
        return v
    return v.astype(compute_dtype)


def _fused_weight(wmu, wsig, eps, compute_dtype):
    """w = mu + (sigma*eps_out) * eps_in, rank-1 noise rebuilt on the VPU.

    Fuses directly in the storage dtype when it matches the MXU feed dtype
    (bf16 VALU on v6e/v7x); otherwise fuses in f32 and casts once (v5e-safe).
    """
    if compute_dtype is not None and wmu.dtype == compute_dtype:
        return wmu + wsig * eps.astype(compute_dtype)
    w = wmu.astype(jnp.float32) + wsig.astype(jnp.float32) * eps.astype(jnp.float32)
    return w if compute_dtype is None else w.astype(compute_dtype)


# ---------------------------------------------------------------------------
# kernels
# ---------------------------------------------------------------------------
def _noisy_kernel_nok(x_ref, wmu_ref, wsig_ref, eps_ref, b_ref, o_ref, *, compute_dtype):
    # Full-K tile: no K grid axis, no accumulator scratch, no pl.when.
    w = _fused_weight(wmu_ref[...], wsig_ref[...], eps_ref[...], compute_dtype)
    x = _maybe_cast(x_ref[...], compute_dtype)
    acc = jnp.dot(x, w, preferred_element_type=jnp.float32)
    o_ref[...] = (acc + b_ref[...]).astype(o_ref.dtype)


def _noisy_kernel_acc(x_ref, wmu_ref, wsig_ref, eps_ref, b_ref, o_ref, acc_ref, *, compute_dtype):
    k = pl.program_id(2)

    @pl.when(k == 0)
    def _():
        acc_ref[...] = jnp.zeros_like(acc_ref)

    w = _fused_weight(wmu_ref[...], wsig_ref[...], eps_ref[...], compute_dtype)
    x = _maybe_cast(x_ref[...], compute_dtype)
    acc_ref[...] += jnp.dot(x, w, preferred_element_type=jnp.float32)

    @pl.when(k == pl.num_programs(2) - 1)
    def _():
        o_ref[...] = (acc_ref[...] + b_ref[...]).astype(o_ref.dtype)


def _plain_kernel_nok(x_ref, w_ref, b_ref, o_ref, *, compute_dtype):
    w = _maybe_cast(w_ref[...], compute_dtype)
    x = _maybe_cast(x_ref[...], compute_dtype)
    acc = jnp.dot(x, w, preferred_element_type=jnp.float32)
    o_ref[...] = (acc + b_ref[...]).astype(o_ref.dtype)


def _plain_kernel_acc(x_ref, w_ref, b_ref, o_ref, acc_ref, *, compute_dtype):
    k = pl.program_id(2)

    @pl.when(k == 0)
    def _():
        acc_ref[...] = jnp.zeros_like(acc_ref)

    w = _maybe_cast(w_ref[...], compute_dtype)
    x = _maybe_cast(x_ref[...], compute_dtype)
    acc_ref[...] += jnp.dot(x, w, preferred_element_type=jnp.float32)

    @pl.when(k == pl.num_programs(2) - 1)
    def _():
        o_ref[...] = (acc_ref[...] + b_ref[...]).astype(o_ref.dtype)


# ---------------------------------------------------------------------------
# pallas_call plumbing
# ---------------------------------------------------------------------------
def _run_tiled_linear(xp, weights, eps_in, b, *, out_dtype, compute_dtype,
                      tm, tn, tk, vmem_limit_bytes):
    mp, Kp = xp.shape
    _, Np = b.shape
    noisy = eps_in is not None
    gm, gn, gk = mp // tm, Np // tn, Kp // tk
    multi_k = gk > 1

    # Advisory cost estimate with per-operand itemsizes.
    x_b = xp.dtype.itemsize
    w_b = weights[0].dtype.itemsize
    o_b = jnp.dtype(out_dtype).itemsize
    bytes_accessed = mp * Kp * x_b + len(weights) * Kp * Np * w_b + mp * Np * o_b + Np * 4
    if noisy:
        bytes_accessed += Kp * eps_in.dtype.itemsize
    cost = pl.CostEstimate(flops=2 * mp * Np * Kp, transcendentals=0,
                           bytes_accessed=int(bytes_accessed))

    if multi_k:
        x_spec = pl.BlockSpec((tm, tk), lambda i, j, k: (i, k))
        w_spec = pl.BlockSpec((tk, tn), lambda i, j, k: (k, j))
        e_spec = pl.BlockSpec((tk, 1), lambda i, j, k: (k, 0))
        b_spec = pl.BlockSpec((1, tn), lambda i, j, k: (0, j))
        o_spec = pl.BlockSpec((tm, tn), lambda i, j, k: (i, j))
        grid = (gm, gn, gk)
        semantics = ("parallel", "parallel", "arbitrary")
        scratch = [pltpu.VMEM((tm, tn), jnp.float32)]
    else:
        x_spec = pl.BlockSpec((tm, tk), lambda i, j: (i, 0))
        w_spec = pl.BlockSpec((tk, tn), lambda i, j: (0, j))
        e_spec = pl.BlockSpec((tk, 1), lambda i, j: (0, 0))
        b_spec = pl.BlockSpec((1, tn), lambda i, j: (0, j))
        o_spec = pl.BlockSpec((tm, tn), lambda i, j: (i, j))
        grid = (gm, gn)
        semantics = ("parallel", "parallel")
        scratch = []

    in_specs = [x_spec] + [w_spec] * len(weights)
    args = [xp] + list(weights)
    if noisy:
        in_specs.append(e_spec)
        args.append(eps_in)
    in_specs.append(b_spec)
    args.append(b)

    if noisy:
        body = _noisy_kernel_acc if multi_k else _noisy_kernel_nok
    else:
        body = _plain_kernel_acc if multi_k else _plain_kernel_nok
    kernel = functools.partial(body, compute_dtype=compute_dtype)

    grid_spec = pltpu.PrefetchScalarGridSpec(
        num_scalar_prefetch=0, grid=grid,
        in_specs=in_specs, out_specs=o_spec, scratch_shapes=scratch)

    return pl.pallas_call(
        kernel,
        out_shape=jax.ShapeDtypeStruct((mp, Np), out_dtype),
        grid_spec=grid_spec,
        compiler_params=pltpu.CompilerParams(
            dimension_semantics=semantics,
            vmem_limit_bytes=vmem_limit_bytes),
        cost_estimate=cost,
    )(*args)


# ---------------------------------------------------------------------------
# param prep (OUTSIDE the hot path: once per reset_noise() / param update)
# ---------------------------------------------------------------------------
def prepare_noisy_linear(params, *, mode="train", store_dtype=None):
    """Pad / transpose / pre-fuse parameters once, outside the forward hot path.

    Weights are stored K-major (Kp, Np) for the MXU-native (tm,tk)x(tk,tn)
    contraction. eps_out is folded into sigma so the in-kernel fuse is
    2 VALU ops/element. b_eff is fully precomputed.

    mode:
      "train"        -> stream mu + sigma*eps_out, rank-1 fuse in-kernel.
      "train_frozen" -> materialize w_eff = mu + sigma*outer(eps_out, eps_in)
                        once (noise frozen between reset_noise calls); single
                        weight stream per forward.
      "eval"         -> weight = mu, bias = mu.
    """
    wmu, wsig = params["weight_mu"], params["weight_sigma"]
    bmu, bsig = params["bias_mu"], params["bias_sigma"]
    eps_in, eps_out = params["eps_in"], params["eps_out"]
    out_features, in_features = wmu.shape
    Kp = _round_up(in_features, 128)
    Np = _round_up(out_features, 128)
    sd = jnp.dtype(store_dtype) if store_dtype is not None else wmu.dtype

    def pad_kn(w_nk):  # (N, K) -> zero-padded, K-major (Kp, Np)
        w = jnp.pad(w_nk, ((0, Np - out_features), (0, Kp - in_features)))
        return w.T.astype(sd)

    prepared = dict(in_features=in_features, out_features=out_features, mode=mode)
    if mode == "train":
        prepared["wmu_kn"] = pad_kn(wmu)
        prepared["wsig_kn"] = pad_kn(wsig * eps_out[:, None])        # eps_out pre-folded
        prepared["eps_in_col"] = jnp.pad(
            eps_in, (0, Kp - in_features)).reshape(Kp, 1).astype(sd)
        b_eff = bmu + bsig * eps_out
    elif mode == "train_frozen":
        w_eff = wmu + wsig * jnp.outer(eps_out, eps_in)
        prepared["w_kn"] = pad_kn(w_eff)
        b_eff = bmu + bsig * eps_out
    elif mode == "eval":
        prepared["w_kn"] = pad_kn(wmu)
        b_eff = bmu
    else:
        raise ValueError(f"unknown mode: {mode}")
    prepared["b_eff"] = jnp.pad(
        b_eff, (0, Np - out_features)).reshape(1, Np).astype(jnp.float32)
    return prepared


# ---------------------------------------------------------------------------
# forward (hot path)
# ---------------------------------------------------------------------------
def noisy_linear_forward(x, prepared, *, compute_dtype=None, tm=None,
                         tn_cap=512, tk_cap=None, vmem_budget_bytes=40 << 20):
    """y = x @ weight.T + bias with NoisyLinear semantics (weights pre-prepared)."""
    mode = prepared["mode"]
    out_features = prepared["out_features"]
    in_features = prepared["in_features"]
    b = prepared["b_eff"]
    if mode == "train":
        weights = [prepared["wmu_kn"], prepared["wsig_kn"]]
        eps_in = prepared["eps_in_col"]
    else:
        weights = [prepared["w_kn"]]
        eps_in = None
    Kp, Np = weights[0].shape
    batch, k_in = x.shape
    assert k_in == in_features
    out_dtype = x.dtype

    # Batch tile: 16-row aligned for 2-byte dtypes (bf16 sublane packing), else 8.
    sub = 16 if jnp.dtype(out_dtype).itemsize == 2 else 8
    if tm is None:
        tm = min(512, _round_up(batch, sub))
    else:
        tm = _round_up(max(sub, min(tm, _round_up(batch, sub))), sub)
    mp = _round_up(batch, tm)

    tn = _pick_tile(Np, tn_cap)
    tk = _pick_tile(Kp, Kp if tk_cap is None else tk_cap)

    # v7x: keep >= 2 parallel grid cells so both TensorCores get work.
    if (mp // tm) * (Np // tn) < 2 and Np // 128 >= 2:
        tn = _pick_tile(Np, tn - 128)

    # Fit the double-buffered working set in the VMEM budget (64 MiB physical on v7x).
    x_b = x.dtype.itemsize
    w_b = weights[0].dtype.itemsize
    o_b = jnp.dtype(out_dtype).itemsize
    nw = len(weights)

    def vmem_need(tm_, tn_, tk_):
        v = 2 * (tm_ * tk_ * x_b + nw * tk_ * tn_ * w_b + tm_ * tn_ * o_b
                 + tn_ * 4 + tk_ * w_b)
        if Kp // tk_ > 1:
            v += tm_ * tn_ * 4                      # f32 accumulator scratch
        return v

    while vmem_need(tm, tn, tk) > vmem_budget_bytes and tk > 128:
        tk = _pick_tile(Kp, tk - 128)
    while vmem_need(tm, tn, tk) > vmem_budget_bytes and tn > 128:
        tn = _pick_tile(Np, tn - 128)
    while vmem_need(tm, tn, tk) > vmem_budget_bytes and tm > sub:
        tm = max(sub, _round_up(tm // 2, sub))
        mp = _round_up(batch, tm)

    # Explicit VMEM limit: v5e's scoped default is only 16 MiB; cap at 64 MiB for v7x.
    vmem_limit = int(min(64 << 20, max(2 * vmem_need(tm, tn, tk), 32 << 20)))

    # Hot-path padding touches only x (params were padded once at prep time).
    if batch == mp and k_in == Kp:
        xp = x
    else:
        xp = jnp.pad(x, ((0, mp - batch), (0, Kp - k_in)))

    yp = _run_tiled_linear(xp, weights, eps_in, b, out_dtype=out_dtype,
                           compute_dtype=compute_dtype, tm=tm, tn=tn, tk=tk,
                           vmem_limit_bytes=vmem_limit)
    return yp[:batch, :out_features]


# ---------------------------------------------------------------------------
# init (mirrors reset_parameters + reset_noise)
# ---------------------------------------------------------------------------
def _scale_noise(key, size):
    x = jax.random.normal(key, (size,), dtype=jnp.float32)
    return jnp.sign(x) * jnp.sqrt(jnp.abs(x))


def init_noisy_linear(key, in_features, out_features, std_init=0.5):
    k_wmu, k_bmu, k_ein, k_eout = jax.random.split(key, 4)
    mu_range = 1.0 / math.sqrt(in_features)
    weight_mu = jax.random.uniform(k_wmu, (out_features, in_features),
                                   minval=-mu_range, maxval=mu_range, dtype=jnp.float32)
    weight_sigma = jnp.full((out_features, in_features),
                            std_init / math.sqrt(in_features), dtype=jnp.float32)
    bias_mu = jax.random.uniform(k_bmu, (out_features,),
                                 minval=-mu_range, maxval=mu_range, dtype=jnp.float32)
    bias_sigma = jnp.full((out_features,),
                          std_init / math.sqrt(out_features), dtype=jnp.float32)
    return dict(weight_mu=weight_mu, weight_sigma=weight_sigma,
                bias_mu=bias_mu, bias_sigma=bias_sigma,
                eps_in=_scale_noise(k_ein, in_features),
                eps_out=_scale_noise(k_eout, out_features))


# ---------------------------------------------------------------------------
# self-test
# ---------------------------------------------------------------------------
if __name__ == "__main__":
    key = jax.random.PRNGKey(0)
    k_params, k_x, k_params2, k_x2 = jax.random.split(key, 4)

    # --- small shape: single-K fast path -----------------------------------
    batch, in_features, out_features = 8, 32, 32
    params = init_noisy_linear(k_params, in_features, out_features)
    x = jax.random.normal(k_x, (batch, in_features), dtype=jnp.float32)

    w_eff = params["weight_mu"] + params["weight_sigma"] * jnp.outer(
        params["eps_out"], params["eps_in"])
    b_eff = params["bias_mu"] + params["bias_sigma"] * params["eps_out"]
    y_ref = x @ w_eff.T + b_eff

    # training mode, f32 streams (tight check)
    prep_train = prepare_noisy_linear(params, mode="train")
    y = jax.block_until_ready(noisy_linear_forward(x, prep_train))
    assert y.shape == (batch, out_features)
    assert jnp.allclose(y, y_ref, atol=1e-5, rtol=1e-5), "train-mode mismatch"

    # training mode, bf16 weight storage + bf16 MXU feed, f32 accumulation
    prep_bf16 = prepare_noisy_linear(params, mode="train", store_dtype=jnp.bfloat16)
    y_bf16 = jax.block_until_ready(
        noisy_linear_forward(x, prep_bf16, compute_dtype=jnp.bfloat16))
    assert jnp.allclose(y_bf16, y_ref, atol=5e-2, rtol=5e-2), "bf16 mismatch"

    # frozen-noise fast path (single weight stream)
    prep_frozen = prepare_noisy_linear(params, mode="train_frozen")
    y_frozen = jax.block_until_ready(noisy_linear_forward(x, prep_frozen))
    assert jnp.allclose(y_frozen, y_ref, atol=1e-5, rtol=1e-5), "frozen-noise mismatch"

    # eval mode fast path (weight = mu, bias = mu)
    prep_eval = prepare_noisy_linear(params, mode="eval")
    y_eval = jax.block_until_ready(noisy_linear_forward(x, prep_eval))
    y_eval_ref = x @ params["weight_mu"].T + params["bias_mu"]
    assert jnp.allclose(y_eval, y_eval_ref, atol=1e-5, rtol=1e-5), "eval-mode mismatch"

    # --- larger K: exercise the K-last accumulator grid --------------------
    b2, k2, n2 = 8, 256, 192
    params2 = init_noisy_linear(k_params2, k2, n2)
    x2 = jax.random.normal(k_x2, (b2, k2), dtype=jnp.float32)
    w_eff2 = params2["weight_mu"] + params2["weight_sigma"] * jnp.outer(
        params2["eps_out"], params2["eps_in"])
    b_eff2 = params2["bias_mu"] + params2["bias_sigma"] * params2["eps_out"]
    y2_ref = x2 @ w_eff2.T + b_eff2
    prep2 = prepare_noisy_linear(params2, mode="train")
    y2 = jax.block_until_ready(
        noisy_linear_forward(x2, prep2, tk_cap=128))   # forces gk=2 -> acc kernel
    assert jnp.allclose(y2, y2_ref, atol=1e-4, rtol=1e-4), "multi-K mismatch"

    print("KERNEL_OK")
</pallas_src>

<mosaic_0001>
module attributes {stable_mosaic.version = 11 : i64} {
  func.func @_noisy_kernel_nok(%arg0: i32, %arg1: i32, %arg2: memref<8x128xf32, #tpu.memory_space<vmem>>, %arg3: memref<128x128xf32, #tpu.memory_space<vmem>>, %arg4: memref<128x128xf32, #tpu.memory_space<vmem>>, %arg5: memref<128x1xf32, #tpu.memory_space<vmem>>, %arg6: memref<1x128xf32, #tpu.memory_space<vmem>>, %arg7: memref<8x128xf32, #tpu.memory_space<vmem>>) attributes {dimension_semantics = [#tpu.dimension_semantics<parallel>, #tpu.dimension_semantics<parallel>], iteration_bounds = array<i64: 1, 1>, scalar_prefetch = 0 : i64, scratch_operands = 0 : i64, tpu.core_type = #tpu.core_type<tc>, window_params = [{transform_indices = @transform_0, window_bounds = array<i64: 8, 128>}, {transform_indices = @transform_1, window_bounds = array<i64: 128, 128>}, {transform_indices = @transform_2, window_bounds = array<i64: 128, 128>}, {pipeline_mode = #tpu.pipeline_mode<synchronous>, transform_indices = @transform_3, window_bounds = array<i64: 128, 1>}, {transform_indices = @transform_4, window_bounds = array<i64: 1, 128>}, {transform_indices = @transform_5, window_bounds = array<i64: 8, 128>}]} {
    %c0 = arith.constant 0 : index
    %c0_0 = arith.constant 0 : index
    %0 = vector.load %arg3[%c0, %c0_0] : memref<128x128xf32, #tpu.memory_space<vmem>>, vector<128x128xf32>
    %c0_1 = arith.constant 0 : index
    %c0_2 = arith.constant 0 : index
    %1 = vector.load %arg4[%c0_1, %c0_2] : memref<128x128xf32, #tpu.memory_space<vmem>>, vector<128x128xf32>
    %c0_3 = arith.constant 0 : index
    %c0_4 = arith.constant 0 : index
    %2 = vector.load %arg5[%c0_3, %c0_4] : memref<128x1xf32, #tpu.memory_space<vmem>>, vector<128x1xf32>
    %3 = vector.broadcast %2 : vector<128x1xf32> to vector<128x128xf32>
    %4 = arith.mulf %1, %3 : vector<128x128xf32>
    %5 = arith.addf %0, %4 : vector<128x128xf32>
    %c0_5 = arith.constant 0 : index
    %c0_6 = arith.constant 0 : index
    %6 = vector.load %arg2[%c0_5, %c0_6] : memref<8x128xf32, #tpu.memory_space<vmem>>, vector<8x128xf32>
    %cst = arith.constant dense<0.000000e+00> : vector<8x128xf32>
    %7 = tpu.matmul %6, %5, %cst {dimension_numbers = #tpu.dot_dimension_numbers<[1], [0], [0], [1], [0, 0, 1, 1], [], []>} : vector<8x128xf32>, vector<128x128xf32>, vector<8x128xf32> -> vector<8x128xf32>
    %c0_7 = arith.constant 0 : index
    %c0_8 = arith.constant 0 : index
    %8 = vector.load %arg6[%c0_7, %c0_8] : memref<1x128xf32, #tpu.memory_space<vmem>>, vector<1x128xf32>
    %9 = vector.broadcast %8 : vector<1x128xf32> to vector<8x128xf32>
    %10 = arith.addf %7, %9 : vector<8x128xf32>
    %c0_9 = arith.constant 0 : index
    %c0_10 = arith.constant 0 : index
    %11 = vector.load %arg7[%c0_9, %c0_10] : memref<8x128xf32, #tpu.memory_space<vmem>>, vector<8x128xf32>
    tpu.vector_store %arg7[%c0_9, %c0_10], %10 {strides = array<i32>} : memref<8x128xf32, #tpu.memory_space<vmem>>, vector<8x128xf32>,
    return
  }
  func.func @transform_0(%arg0: i32, %arg1: i32) -> (i32, i32) {
    %c0_i32 = arith.constant 0 : i32
    %c0_i32_0 = arith.constant 0 : i32
    return %arg0, %c0_i32 : i32, i32
  }
  func.func @transform_1(%arg0: i32, %arg1: i32) -> (i32, i32) {
    %c0_i32 = arith.constant 0 : i32
    %c0_i32_0 = arith.constant 0 : i32
    return %c0_i32, %arg1 : i32, i32
  }
  func.func @transform_2(%arg0: i32, %arg1: i32) -> (i32, i32) {
    %c0_i32 = arith.constant 0 : i32
    %c0_i32_0 = arith.constant 0 : i32
    return %c0_i32, %arg1 : i32, i32
  }
  func.func @transform_3(%arg0: i32, %arg1: i32) -> (i32, i32) {
    %c0_i32 = arith.constant 0 : i32
    %c0_i32_0 = arith.constant 0 : i32
    %c0_i32_1 = arith.constant 0 : i32
    return %c0_i32, %c0_i32_0 : i32, i32
  }
  func.func @transform_4(%arg0: i32, %arg1: i32) -> (i32, i32) {
    %c0_i32 = arith.constant 0 : i32
    %c0_i32_0 = arith.constant 0 : i32
    return %c0_i32, %arg1 : i32, i32
  }
  func.func @transform_5(%arg0: i32, %arg1: i32) -> (i32, i32) {
    %c0_i32 = arith.constant 0 : i32
    return %arg0, %arg1 : i32, i32
  }
}

</mosaic_0001>

<llo_original>
// kernel: tpu_custom_call.1
$region0: #{tpu_custom_call.1}
  #allocation0 [shape = 'u32[]', space=smem, size = 0x4, offset = 0x4, fixed_abs, tag = 'smem constant byte address 0x4 - core index']
  #allocation1 [shape = 'u32[144,128]{1,0:T(1,128)}', space=vmem, size = 0x12000, scoped, tag = 'internal scratch']
  %s0 = inlined_call_operand.hbm [shape: f32[8,128], index: 0, kind: input, shape index: {}]
  %s1 = inlined_call_operand.vmem [shape: f32[128,128], index: 1, kind: input, shape index: {}]
  %s2 = inlined_call_operand.hbm [shape: f32[128,128], index: 2, kind: input, shape index: {}]
  %s3 = inlined_call_operand.vmem [shape: f32[128,1], index: 3, kind: input, shape index: {}]
  %s4 = inlined_call_operand.vmem [shape: f32[1,128], index: 4, kind: input, shape index: {}]
  %s5 = inlined_call_operand.hbm [shape: f32[8,128], index: 5, kind: output, shape index: {}]
  %s6 = sld [smem:[#allocation0]]
  $region38: #{tpu_custom_call.1} parent=0
    _
  %s8 = ssub.s32 1, %s6
  %s9 = scalar_select 0, %s8, %s6
  $region1: #{tpu_custom_call.1} parent=0
    #allocation2 [shape = 'u8[4096]{0}', space=vmem, size = 0x1000, scoped, tag = 'input window, operand 0, single buffered']
    #allocation3 [shape = 's32[1]{0}', space=sflag, size = 0x4, scoped, tag = 'scoped memory for tpu_custom_call.1']
    #allocation4 [shape = 's32[1]{0}', space=sflag, size = 0x4, scoped, tag = 'scoped memory for tpu_custom_call.1']
    #allocation5 [shape = 'u8[65536]{0}', space=vmem, size = 0x10000, scoped, tag = 'input window, operand 2, single buffered']
    #allocation6 [shape = 's32[1]{0}', space=sflag, size = 0x4, scoped, tag = 'scoped memory for tpu_custom_call.1']
    #allocation7 [shape = 'u8[4096]{0}', space=vmem, size = 0x1000, scoped, tag = 'output window, operand 0, single buffered']
    %10 = vsyncpa [#allocation3], 0
    %11 = vsyncpa [#allocation6], 0
    %12 = vsyncpa [#allocation4], 0
    // Predicated region
    $region2: #{tpu_custom_call.1} parent=1 // pred_check
      _
    $region3: #{tpu_custom_call.1} parent=1 // pred_check_branch
      %14 = sbr.rel (0) target = $region5
    $region4: #{tpu_custom_call.1} parent=1 // pred_region
      %s16 = ssub.s32 128, 128
      %17 = vsyncadd [#allocation3], %s16
      %s19 = sshll.u32 [#allocation2], 4
      %s20 = int_to_ptr.vmem [resolvable:$true] %s19
      %22 = dma.hbm_to_vmem [thread:$0]  %s0, 128, %s20, [#allocation3]
    $region5: #{tpu_custom_call.1} parent=1 // pred_fallthru
      _
    // Predicated region
    $region6: #{tpu_custom_call.1} parent=1 // pred_check
      _
    $region7: #{tpu_custom_call.1} parent=1 // pred_check_branch
      %24 = sbr.rel (0) target = $region9
    $region8: #{tpu_custom_call.1} parent=1 // pred_region
      _
    $region9: #{tpu_custom_call.1} parent=1 // pred_fallthru
      _
    // Predicated region
    $region10: #{tpu_custom_call.1} parent=1 // pred_check
      _
    $region11: #{tpu_custom_call.1} parent=1 // pred_check_branch
      %26 = sbr.rel (0) target = $region13
    $region12: #{tpu_custom_call.1} parent=1 // pred_region
      %s28 = ssub.s32 2048, 2048
      %29 = vsyncadd [#allocation6], %s28
      %s30 = sshll.u32 [#allocation5], 4
      %s31 = int_to_ptr.vmem [resolvable:$true] %s30
      %36 = dma.hbm_to_vmem [thread:$0]  %s2, 2048, %s31, [#allocation6], 128, 128, 8
    $region13: #{tpu_custom_call.1} parent=1 // pred_fallthru
      _
    // Predicated region
    $region14: #{tpu_custom_call.1} parent=1 // pred_check
      _
    $region15: #{tpu_custom_call.1} parent=1 // pred_check_branch
      %38 = sbr.rel (0) target = $region17
    $region16: #{tpu_custom_call.1} parent=1 // pred_region
      _
    $region17: #{tpu_custom_call.1} parent=1 // pred_fallthru
      _
    // Predicated region
    $region18: #{tpu_custom_call.1} parent=1 // pred_check
      _
    $region19: #{tpu_custom_call.1} parent=1 // pred_check_branch
      %40 = sbr.rel (0) target = $region21
    $region20: #{tpu_custom_call.1} parent=1 // pred_region
      _
    $region21: #{tpu_custom_call.1} parent=1 // pred_fallthru
      _
    // Predicated region
    $region22: #{tpu_custom_call.1} parent=1 // pred_check
      _
    $region23: #{tpu_custom_call.1} parent=1 // pred_check_branch
      %42 = sbr.rel (0) target = $region25
    $region24: #{tpu_custom_call.1} parent=1 // pred_region
      %43 = dma.done [#allocation3], 128
    $region25: #{tpu_custom_call.1} parent=1 // pred_fallthru
      _
    // Predicated region
    $region26: #{tpu_custom_call.1} parent=1 // pred_check
      _
    $region27: #{tpu_custom_call.1} parent=1 // pred_check_branch
      %45 = sbr.rel (0) target = $region29
    $region28: #{tpu_custom_call.1} parent=1 // pred_region
      %46 = dma.done [#allocation6], 2048
    $region29: #{tpu_custom_call.1} parent=1 // pred_fallthru
      _
    %v47 = vld [vmem:[%s1] sm:$0xff]
    %v48 = vld [vmem:[%s1 + $0x8] sm:$0xff]
    %v49 = vld [vmem:[%s1 + $0x10] sm:$0xff]
    %v50 = vld [vmem:[%s1 + $0x18] sm:$0xff]
    %v51 = vld [vmem:[%s1 + $0x20] sm:$0xff]
    %v52 = vld [vmem:[%s1 + $0x28] sm:$0xff]
    %v53 = vld [vmem:[%s1 + $0x30] sm:$0xff]
    %v54 = vld [vmem:[%s1 + $0x38] sm:$0xff]
    %v55 = vld [vmem:[%s1 + $0x40] sm:$0xff]
    %v56 = vld [vmem:[%s1 + $0x48] sm:$0xff]
    %v57 = vld [vmem:[%s1 + $0x50] sm:$0xff]
    %v58 = vld [vmem:[%s1 + $0x58] sm:$0xff]
    %v59 = vld [vmem:[%s1 + $0x60] sm:$0xff]
    %v60 = vld [vmem:[%s1 + $0x68] sm:$0xff]
    %v61 = vld [vmem:[%s1 + $0x70] sm:$0xff]
    %v62 = vld [vmem:[%s1 + $0x78] sm:$0xff]
    %v63 = vld [vmem:[#allocation5] sm:$0xff]
    %v64 = vld [vmem:[#allocation5 + $0x8] sm:$0xff]
    %v65 = vld [vmem:[#allocation5 + $0x10] sm:$0xff]
    %v66 = vld [vmem:[#allocation5 + $0x18] sm:$0xff]
    %v67 = vld [vmem:[#allocation5 + $0x20] sm:$0xff]
    %v68 = vld [vmem:[#allocation5 + $0x28] sm:$0xff]
    %v69 = vld [vmem:[#allocation5 + $0x30] sm:$0xff]
    %v70 = vld [vmem:[#allocation5 + $0x38] sm:$0xff]
    %v71 = vld [vmem:[#allocation5 + $0x40] sm:$0xff]
    %v72 = vld [vmem:[#allocation5 + $0x48] sm:$0xff]
    %v73 = vld [vmem:[#allocation5 + $0x50] sm:$0xff]
    %v74 = vld [vmem:[#allocation5 + $0x58] sm:$0xff]
    %v75 = vld [vmem:[#allocation5 + $0x60] sm:$0xff]
    %v76 = vld [vmem:[#allocation5 + $0x68] sm:$0xff]
    %v77 = vld [vmem:[#allocation5 + $0x70] sm:$0xff]
    %v78 = vld [vmem:[#allocation5 + $0x78] sm:$0xff]
    %v79 = vld [vmem:[%s3] sm:$0xff]
    %v80 = vld [vmem:[%s3 + $0x8] sm:$0xff]
    %v81 = vld [vmem:[%s3 + $0x10] sm:$0xff]
    %v82 = vld [vmem:[%s3 + $0x18] sm:$0xff]
    %v83 = vld [vmem:[%s3 + $0x20] sm:$0xff]
    %v84 = vld [vmem:[%s3 + $0x28] sm:$0xff]
    %v85 = vld [vmem:[%s3 + $0x30] sm:$0xff]
    %v86 = vld [vmem:[%s3 + $0x38] sm:$0xff]
    %v87 = vld [vmem:[%s3 + $0x40] sm:$0xff]
    %v88 = vld [vmem:[%s3 + $0x48] sm:$0xff]
    %v89 = vld [vmem:[%s3 + $0x50] sm:$0xff]
    %v90 = vld [vmem:[%s3 + $0x58] sm:$0xff]
    %v91 = vld [vmem:[%s3 + $0x60] sm:$0xff]
    %v92 = vld [vmem:[%s3 + $0x68] sm:$0xff]
    %v93 = vld [vmem:[%s3 + $0x70] sm:$0xff]
    %v94 = vld [vmem:[%s3 + $0x78] sm:$0xff]
    %96 = vset.pattern.permute.xlu0 0
    %97 = vperm.xlu0 %96, %v79
    %v98 = vpop.permute.xlu0 %97
    %101 = vset.pattern.permute.xlu0 0
    %102 = vperm.xlu0 %101, %v80
    %v103 = vpop.permute.xlu0 %102
    %106 = vset.pattern.permute.xlu0 0
    %107 = vperm.xlu0 %106, %v81
    %v108 = vpop.permute.xlu0 %107
    %111 = vset.pattern.permute.xlu0 0
    %112 = vperm.xlu0 %111, %v82
    %v113 = vpop.permute.xlu0 %112
    %116 = vset.pattern.permute.xlu0 0
    %117 = vperm.xlu0 %116, %v83
    %v118 = vpop.permute.xlu0 %117
    %121 = vset.pattern.permute.xlu0 0
    %122 = vperm.xlu0 %121, %v84
    %v123 = vpop.permute.xlu0 %122
    %126 = vset.pattern.permute.xlu0 0
    %127 = vperm.xlu0 %126, %v85
    %v128 = vpop.permute.xlu0 %127
    %131 = vset.pattern.permute.xlu0 0
    %132 = vperm.xlu0 %131, %v86
    %v133 = vpop.permute.xlu0 %132
    %136 = vset.pattern.permute.xlu0 0
    %137 = vperm.xlu0 %136, %v87
    %v138 = vpop.permute.xlu0 %137
    %141 = vset.pattern.permute.xlu0 0
    %142 = vperm.xlu0 %141, %v88
    %v143 = vpop.permute.xlu0 %142
    %146 = vset.pattern.permute.xlu0 0
    %147 = vperm.xlu0 %146, %v89
    %v148 = vpop.permute.xlu0 %147
    %151 = vset.pattern.permute.xlu0 0
    %152 = vperm.xlu0 %151, %v90
    %v153 = vpop.permute.xlu0 %152
    %156 = vset.pattern.permute.xlu0 0
    %157 = vperm.xlu0 %156, %v91
    %v158 = vpop.permute.xlu0 %157
    %161 = vset.pattern.permute.xlu0 0
    %162 = vperm.xlu0 %161, %v92
    %v163 = vpop.permute.xlu0 %162
    %166 = vset.pattern.permute.xlu0 0
    %167 = vperm.xlu0 %166, %v93
    %v168 = vpop.permute.xlu0 %167
    %171 = vset.pattern.permute.xlu0 0
    %172 = vperm.xlu0 %171, %v94
    %v173 = vpop.permute.xlu0 %172
    %v175 = vmul.f32 %v63, %v98
    %v176 = vmul.f32 %v64, %v103
    %v177 = vmul.f32 %v65, %v108
    %v178 = vmul.f32 %v66, %v113
    %v179 = vmul.f32 %v67, %v118
    %v180 = vmul.f32 %v68, %v123
    %v181 = vmul.f32 %v69, %v128
    %v182 = vmul.f32 %v70, %v133
    %v183 = vmul.f32 %v71, %v138
    %v184 = vmul.f32 %v72, %v143
    %v185 = vmul.f32 %v73, %v148
    %v186 = vmul.f32 %v74, %v153
    %v187 = vmul.f32 %v75, %v158
    %v188 = vmul.f32 %v76, %v163
    %v189 = vmul.f32 %v77, %v168
    %v190 = vmul.f32 %v78, %v173
    %v191 = vadd.f32 %v47, %v175
    %v192 = vadd.f32 %v48, %v176
    %v193 = vadd.f32 %v49, %v177
    %v194 = vadd.f32 %v50, %v178
    %v195 = vadd.f32 %v51, %v179
    %v196 = vadd.f32 %v52, %v180
    %v197 = vadd.f32 %v53, %v181
    %v198 = vadd.f32 %v54, %v182
    %v199 = vadd.f32 %v55, %v183
    %v200 = vadd.f32 %v56, %v184
    %v201 = vadd.f32 %v57, %v185
    %v202 = vadd.f32 %v58, %v186
    %v203 = vadd.f32 %v59, %v187
    %v204 = vadd.f32 %v60, %v188
    %v205 = vadd.f32 %v61, %v189
    %v206 = vadd.f32 %v62, %v190
    %v207 = vld [vmem:[#allocation2] sm:$0xff]
    %v208 = vld [vmem:[%s4] sm:$0x1]
    %v210 = vlaneseq
    %v211 = vshrl.u32 %v210, 7
    %v212 = vsub.s32 0, %v211
    %v213 = vrot.slane %v208, %v212
    %215 = vmatprep.subr.mxu0 0.0
    %216 = vmatpush1.msra.mxu0 %v206
    %217 = vmatprep.subr.mxu0 0.0
    %218 = vmatpush1.msra.mxu0 %v205
    %219 = vmatprep.subr.mxu0 0.0
    %220 = vmatpush1.msra.mxu0 %v204
    %221 = vmatprep.subr.mxu0 0.0
    %222 = vmatpush1.msra.mxu0 %v203
    %223 = vmatprep.subr.mxu0 0.0
    %224 = vmatpush1.msra.mxu0 %v202
    %225 = vmatprep.subr.mxu0 0.0
    %226 = vmatpush1.msra.mxu0 %v201
    %227 = vmatprep.subr.mxu0 0.0
    %228 = vmatpush1.msra.mxu0 %v200
    %229 = vmatprep.subr.mxu0 0.0
    %230 = vmatpush1.msra.mxu0 %v199
    %231 = vmatprep.subr.mxu0 0.0
    %232 = vmatpush1.msra.mxu0 %v198
    %233 = vmatprep.subr.mxu0 0.0
    %234 = vmatpush1.msra.mxu0 %v197
    %235 = vmatprep.subr.mxu0 0.0
    %236 = vmatpush1.msra.mxu0 %v196
    %237 = vmatprep.subr.mxu0 0.0
    %238 = vmatpush1.msra.mxu0 %v195
    %239 = vmatprep.subr.mxu0 0.0
    %240 = vmatpush1.msra.mxu0 %v194
    %241 = vmatprep.subr.mxu0 0.0
    %242 = vmatpush1.msra.mxu0 %v193
    %243 = vmatprep.subr.mxu0 0.0
    %244 = vmatpush1.msra.mxu0 %v192
    %245 = vmatprep.subr.mxu0 0.0
    %246 = vmatpush1.msra.mxu0 %v191
    %247 = vmatprep.subr.mxu0 0.0
    %248 = vmatpush2.msra.mxu0 0.0
    %249 = vmatprep.subr.mxu0 0.0
    %250 = vmatpush2.msra.mxu0 0.0
    %251 = vmatprep.subr.mxu0 0.0
    %252 = vmatpush2.msra.mxu0 0.0
    %253 = vmatprep.subr.mxu0 0.0
    %254 = vmatpush2.msra.mxu0 0.0
    %255 = vmatprep.subr.mxu0 0.0
    %256 = vmatpush2.msra.mxu0 0.0
    %257 = vmatprep.subr.mxu0 0.0
    %258 = vmatpush2.msra.mxu0 0.0
    %259 = vmatprep.subr.mxu0 0.0
    %260 = vmatpush2.msra.mxu0 0.0
    %261 = vmatprep.subr.mxu0 0.0
    %262 = vmatpush2.msra.mxu0 0.0
    %263 = vmatprep.subr.mxu0 0.0
    %264 = vmatpush2.msra.mxu0 0.0
    %265 = vmatprep.subr.mxu0 0.0
    %266 = vmatpush2.msra.mxu0 0.0
    %267 = vmatprep.subr.mxu0 0.0
    %268 = vmatpush2.msra.mxu0 0.0
    %269 = vmatprep.subr.mxu0 0.0
    %270 = vmatpush2.msra.mxu0 0.0
    %271 = vmatprep.subr.mxu0 0.0
    %272 = vmatpush2.msra.mxu0 0.0
    %273 = vmatprep.subr.mxu0 0.0
    %274 = vmatpush2.msra.mxu0 0.0
    %275 = vmatprep.subr.mxu0 0.0
    %276 = vmatpush2.msra.mxu0 0.0
    %277 = vmatprep.subr.mxu0 0.0
    %278 = vmatpush2.msra.mxu0 0.0
    %279 = vmatprep.mubr.f32.mxu0 0.0
    %280 = vmatmul.mubr.f32.gmra.mxu0 %v207
    %v281 = vpop.f32.mrf.mxu0
    %v282 = vadd.f32 %v213, %v281
    %v283 = vpop.f32.mrf.mxu0
    %284 = vdwg.mxu0
    %285 = vst [vmem:[#allocation7] sm:$0xff] %v282
    // Predicated region
    $region30: #{tpu_custom_call.1} parent=1 // pred_check
      _
    $region31: #{tpu_custom_call.1} parent=1 // pred_check_branch
      %287 = sbr.rel (0) target = $region33
    $region32: #{tpu_custom_call.1} parent=1 // pred_region
      %s289 = ssub.s32 128, 128
      %290 = vsyncadd [#allocation4], %s289
      %s292 = sshll.u32 [#allocation7], 4
      %s293 = int_to_ptr.vmem [resolvable:$true] %s292
      %295 = dma.vmem_to_hbm [thread:$0]  %s293, 128, %s5, [#allocation4]
    $region33: #{tpu_custom_call.1} parent=1 // pred_fallthru
      _
    // Predicated region
    $region34: #{tpu_custom_call.1} parent=1 // pred_check
      _
    $region35: #{tpu_custom_call.1} parent=1 // pred_check_branch
      %297 = sbr.rel (0) target = $region37
    $region36: #{tpu_custom_call.1} parent=1 // pred_region
      %298 = dma.done [#allocation4], 128
    $region37: #{tpu_custom_call.1} parent=1 // pred_fallthru
      _
    %299 = vsyncpa [#allocation3], 1
    %300 = vsyncpa [#allocation6], 1
    %301 = vsyncpa [#allocation4], 1

</llo_original>
